<compile_context>
chip_gen: v5e
topology: v5e:2x2
jax: 0.10.0
libtpu: 0.0.40
codegen_flags: <defaults>
</compile_context>

<pallas_src>
import jax
import jax.numpy as jnp
from jax.experimental import pallas as pl
from jax.experimental.pallas import tpu as pltpu

LANES = 128
SUBLANES = 8


def _mse_partial_kernel(preds_ref, trues_ref, partial_ref):
    """One grid step: squared error over a (block_rows, 128) tile, reduced to an
    (8, 128) lane-dense partial-sum tile (VPU-only reduction)."""
    p = preds_ref[...].astype(jnp.float32)   # widen in-register only
    t = trues_ref[...].astype(jnp.float32)
    d = p - t
    sq = d * d                               # (block_rows, 128) f32
    # Fold the sublane-tiled row axis -> one (8, 128) partial tile.
    # reshape keeps the trailing (8, 128) vreg tiling, so it is a layout no-op.
    partial_ref[...] = jnp.sum(sq.reshape(-1, SUBLANES, LANES), axis=0)


def _round_up(x, m):
    return ((x + m - 1) // m) * m


def mse_loss_pallas(preds, trues, *, block_rows=1024):
    """mean((preds - trues)**2) over all elements (== torch.nn.MSELoss())."""
    assert preds.shape == trues.shape, (preds.shape, trues.shape)
    n = preds.size
    p = preds.reshape(-1)
    t = trues.reshape(-1)

    rows = pl.cdiv(n, LANES)
    block_rows = max(
        SUBLANES,
        min(_round_up(block_rows, SUBLANES), _round_up(rows, SUBLANES)),
    )
    padded_rows = _round_up(rows, block_rows)
    num_tiles = padded_rows // block_rows

    pad = padded_rows * LANES - n
    # Zero-pad BOTH operands: the padded tail has diff == 0, so it adds nothing.
    if pad:
        p = jnp.pad(p, (0, pad))
        t = jnp.pad(t, (0, pad))
    p2 = p.reshape(padded_rows, LANES)
    t2 = t.reshape(padded_rows, LANES)

    itemsize = jnp.dtype(preds.dtype).itemsize
    cost = pl.CostEstimate(
        flops=3 * padded_rows * LANES,  # sub + mul + add-reduce
        transcendentals=0,
        bytes_accessed=padded_rows * LANES * 2 * itemsize
        + num_tiles * SUBLANES * LANES * 4,
    )

    partials = pl.pallas_call(
        _mse_partial_kernel,
        out_shape=jax.ShapeDtypeStruct((num_tiles * SUBLANES, LANES), jnp.float32),
        grid=(num_tiles,),
        in_specs=[
            pl.BlockSpec((block_rows, LANES), lambda i: (i, 0)),
            pl.BlockSpec((block_rows, LANES), lambda i: (i, 0)),
        ],
        out_specs=pl.BlockSpec((SUBLANES, LANES), lambda i: (i, 0)),
        compiler_params=pltpu.CompilerParams(
            dimension_semantics=("parallel",),  # shards tiles across both TCs on v7x
        ),
        cost_estimate=cost,
    )(p2, t2)

    # Tiny final reduction + mean stay in the wrapper (keeps the grid axis parallel).
    return jnp.sum(partials) / n


# HateTask.__init__ stores importance=config['mtl_importances']['score'] but
# compute() does NOT fold it into the loss; the MTL aggregator applies it.
SCORE_IMPORTANCE = 1.0


def score_task_forward(output, batch):
    """ScoreTask.forward: pure pass-through, no compute."""
    return {"preds": output, "trues": batch["score"]}


def score_task_compute(hidden_output, batch):
    """HateTask.compute() pipeline specialized for ScoreTask: forward -> metrics -> loss."""
    results = score_task_forward(hidden_output, batch)
    mse = mse_loss_pallas(results["preds"], results["trues"])
    metrics = {"score_mse": mse}  # reg.MeanSquaredError == the MSE value
    loss = mse                    # nn.MSELoss()(preds, trues)
    return metrics, loss


if __name__ == "__main__":
    key = jax.random.PRNGKey(0)
    k1, k2, k3, k4 = jax.random.split(key, 4)

    # Small shape consistent with ScoreTask: one regression score per sample.
    B = 8
    preds = jax.random.normal(k1, (B,), dtype=jnp.float32)       # model output for score head
    batch = {"score": jax.random.normal(k2, (B,), dtype=jnp.float32)}

    metrics, loss = score_task_compute(preds, batch)
    jax.block_until_ready(loss)

    ref = jnp.mean((preds - batch["score"]) ** 2)
    assert jnp.allclose(loss, ref, atol=1e-6, rtol=1e-6), (loss, ref)
    assert jnp.allclose(metrics["score_mse"], ref, atol=1e-6, rtol=1e-6)

    # Multi-tile + padding path (grid > 1, size not a multiple of the tile), still small.
    p_big = jax.random.normal(k3, (4, 700), dtype=jnp.float32)
    t_big = jax.random.normal(k4, (4, 700), dtype=jnp.float32)
    loss_big = mse_loss_pallas(p_big, t_big, block_rows=8)
    jax.block_until_ready(loss_big)
    ref_big = jnp.mean((p_big - t_big) ** 2)
    assert jnp.allclose(loss_big, ref_big, atol=1e-5, rtol=1e-5), (loss_big, ref_big)

    # bf16 input path: DMA stays narrow, math widens to f32 in-register.
    p_bf = p_big.astype(jnp.bfloat16)
    t_bf = t_big.astype(jnp.bfloat16)
    loss_bf = mse_loss_pallas(p_bf, t_bf)
    jax.block_until_ready(loss_bf)
    ref_bf = jnp.mean((p_bf.astype(jnp.float32) - t_bf.astype(jnp.float32)) ** 2)
    assert jnp.allclose(loss_bf, ref_bf, atol=1e-3, rtol=1e-3), (loss_bf, ref_bf)

    print("KERNEL_OK")
</pallas_src>

<mosaic_0001>
module attributes {stable_mosaic.version = 11 : i64} {
  func.func @_mse_partial_kernel(%arg0: i32, %arg1: memref<8x128xf32, #tpu.memory_space<vmem>>, %arg2: memref<8x128xf32, #tpu.memory_space<vmem>>, %arg3: memref<8x128xf32, #tpu.memory_space<vmem>>) attributes {dimension_semantics = [#tpu.dimension_semantics<parallel>], iteration_bounds = array<i64: 1>, scalar_prefetch = 0 : i64, scratch_operands = 0 : i64, tpu.core_type = #tpu.core_type<tc>, window_params = [{transform_indices = @transform_0, window_bounds = array<i64: 8, 128>}, {transform_indices = @transform_1, window_bounds = array<i64: 8, 128>}, {transform_indices = @transform_2, window_bounds = array<i64: 8, 128>}]} {
    %c0 = arith.constant 0 : index
    %c0_0 = arith.constant 0 : index
    %0 = vector.load %arg1[%c0, %c0_0] : memref<8x128xf32, #tpu.memory_space<vmem>>, vector<8x128xf32>
    %c0_1 = arith.constant 0 : index
    %c0_2 = arith.constant 0 : index
    %1 = vector.load %arg2[%c0_1, %c0_2] : memref<8x128xf32, #tpu.memory_space<vmem>>, vector<8x128xf32>
    %2 = arith.subf %0, %1 : vector<8x128xf32>
    %3 = arith.mulf %2, %2 : vector<8x128xf32>
    %4 = vector.shape_cast %3 : vector<8x128xf32> to vector<1x8x128xf32>
    %cst = arith.constant dense<0.000000e+00> : vector<8x128xf32>
    %5 = vector.multi_reduction <add>, %4, %cst [0] : vector<1x8x128xf32> to vector<8x128xf32>
    %c0_3 = arith.constant 0 : index
    %c0_4 = arith.constant 0 : index
    %6 = vector.load %arg3[%c0_3, %c0_4] : memref<8x128xf32, #tpu.memory_space<vmem>>, vector<8x128xf32>
    tpu.vector_store %arg3[%c0_3, %c0_4], %5 {strides = array<i32>} : memref<8x128xf32, #tpu.memory_space<vmem>>, vector<8x128xf32>,
    return
  }
  func.func @transform_0(%arg0: i32) -> (i32, i32) {
    %c0_i32 = arith.constant 0 : i32
    %c0_i32_0 = arith.constant 0 : i32
    return %arg0, %c0_i32 : i32, i32
  }
  func.func @transform_1(%arg0: i32) -> (i32, i32) {
    %c0_i32 = arith.constant 0 : i32
    %c0_i32_0 = arith.constant 0 : i32
    return %arg0, %c0_i32 : i32, i32
  }
  func.func @transform_2(%arg0: i32) -> (i32, i32) {
    %c0_i32 = arith.constant 0 : i32
    %c0_i32_0 = arith.constant 0 : i32
    return %arg0, %c0_i32 : i32, i32
  }
}

</mosaic_0001>

<llo_original>
// kernel: tpu_custom_call.1
$region0: #{tpu_custom_call.1}
  #allocation0 [shape = 'u32[]', space=smem, size = 0x4, offset = 0x4, fixed_abs, tag = 'smem constant byte address 0x4 - core index']
  #allocation1 [shape = 'u32[72,128]{1,0:T(1,128)}', space=vmem, size = 0x9000, scoped, tag = 'internal scratch']
  %s0 = inlined_call_operand.hbm [shape: f32[8,128], index: 0, kind: input, shape index: {}]
  %s1 = inlined_call_operand.hbm [shape: f32[8,128], index: 1, kind: input, shape index: {}]
  %s2 = inlined_call_operand.hbm [shape: f32[8,128], index: 2, kind: output, shape index: {}]
  %s3 = sld [smem:[#allocation0]]
  $region26: #{tpu_custom_call.1} parent=0
    _
  %s5 = ssub.s32 1, %s3
  %s6 = scalar_select 0, %s5, %s3
  $region1: #{tpu_custom_call.1} parent=0
    #allocation2 [shape = 'u8[4096]{0}', space=vmem, size = 0x1000, scoped, tag = 'input window, operand 0, single buffered']
    #allocation3 [shape = 's32[1]{0}', space=sflag, size = 0x4, scoped, tag = 'scoped memory for tpu_custom_call.1']
    #allocation4 [shape = 's32[1]{0}', space=sflag, size = 0x4, scoped, tag = 'scoped memory for tpu_custom_call.1']
    #allocation5 [shape = 'u8[4096]{0}', space=vmem, size = 0x1000, scoped, tag = 'input window, operand 1, single buffered']
    #allocation6 [shape = 's32[1]{0}', space=sflag, size = 0x4, scoped, tag = 'scoped memory for tpu_custom_call.1']
    #allocation7 [shape = 'u8[4096]{0}', space=vmem, size = 0x1000, scoped, tag = 'output window, operand 0, single buffered']
    %7 = vsyncpa [#allocation3], 0
    %8 = vsyncpa [#allocation6], 0
    %9 = vsyncpa [#allocation4], 0
    // Predicated region
    $region2: #{tpu_custom_call.1} parent=1 // pred_check
      _
    $region3: #{tpu_custom_call.1} parent=1 // pred_check_branch
      %11 = sbr.rel (0) target = $region5
    $region4: #{tpu_custom_call.1} parent=1 // pred_region
      %13 = vsyncadd [#allocation3], 0
      %s15 = sshll.u32 %s0, 4
      %s16 = int_to_ptr.hbm [resolvable:$true] %s15
      %s17 = sshll.u32 [#allocation2], 4
      %s18 = int_to_ptr.vmem [resolvable:$true] %s17
      %20 = dma.hbm_to_vmem [thread:$0]  %s16, 128, %s18, [#allocation3]
    $region5: #{tpu_custom_call.1} parent=1 // pred_fallthru
      _
    // Predicated region
    $region6: #{tpu_custom_call.1} parent=1 // pred_check
      _
    $region7: #{tpu_custom_call.1} parent=1 // pred_check_branch
      %22 = sbr.rel (0) target = $region9
    $region8: #{tpu_custom_call.1} parent=1 // pred_region
      %24 = vsyncadd [#allocation6], 0
      %s26 = sshll.u32 %s1, 4
      %s27 = int_to_ptr.hbm [resolvable:$true] %s26
      %s28 = sshll.u32 [#allocation5], 4
      %s29 = int_to_ptr.vmem [resolvable:$true] %s28
      %31 = dma.hbm_to_vmem [thread:$0]  %s27, 128, %s29, [#allocation6]
    $region9: #{tpu_custom_call.1} parent=1 // pred_fallthru
      _
    // Predicated region
    $region10: #{tpu_custom_call.1} parent=1 // pred_check
      _
    $region11: #{tpu_custom_call.1} parent=1 // pred_check_branch
      %33 = sbr.rel (0) target = $region13
    $region12: #{tpu_custom_call.1} parent=1 // pred_region
      %35 = dma.done [#allocation3], 128
    $region13: #{tpu_custom_call.1} parent=1 // pred_fallthru
      _
    // Predicated region
    $region14: #{tpu_custom_call.1} parent=1 // pred_check
      _
    $region15: #{tpu_custom_call.1} parent=1 // pred_check_branch
      %37 = sbr.rel (0) target = $region17
    $region16: #{tpu_custom_call.1} parent=1 // pred_region
      %39 = dma.done [#allocation6], 128
    $region17: #{tpu_custom_call.1} parent=1 // pred_fallthru
      _
    %v40 = vld [vmem:[#allocation2] sm:$0xff]
    %v41 = vld [vmem:[#allocation5] sm:$0xff]
    %v42 = vsub.f32 %v40, %v41
    %v43 = vmul.f32 %v42, %v42
    %v44 = vadd.f32 %v43, 0.0
    %45 = vst [vmem:[#allocation7] sm:$0xff] %v44
    // Predicated region
    $region18: #{tpu_custom_call.1} parent=1 // pred_check
      _
    $region19: #{tpu_custom_call.1} parent=1 // pred_check_branch
      %47 = sbr.rel (0) target = $region21
    $region20: #{tpu_custom_call.1} parent=1 // pred_region
      %49 = vsyncadd [#allocation4], 0
      %s51 = sshll.u32 [#allocation7], 4
      %s52 = int_to_ptr.vmem [resolvable:$true] %s51
      %s53 = sshll.u32 %s2, 4
      %s54 = int_to_ptr.hbm [resolvable:$true] %s53
      %56 = dma.vmem_to_hbm [thread:$0]  %s52, 128, %s54, [#allocation4]
    $region21: #{tpu_custom_call.1} parent=1 // pred_fallthru
      _
    // Predicated region
    $region22: #{tpu_custom_call.1} parent=1 // pred_check
      _
    $region23: #{tpu_custom_call.1} parent=1 // pred_check_branch
      %58 = sbr.rel (0) target = $region25
    $region24: #{tpu_custom_call.1} parent=1 // pred_region
      %60 = dma.done [#allocation4], 128
    $region25: #{tpu_custom_call.1} parent=1 // pred_fallthru
      _
    %61 = vsyncpa [#allocation3], 1
    %62 = vsyncpa [#allocation6], 1
    %63 = vsyncpa [#allocation4], 1

</llo_original>
